<compile_context>
chip_gen: v7x
topology: tpu7x:2x2x1
jax: 0.10.0
libtpu: 0.0.40
codegen_flags: <defaults>
</compile_context>

<pallas_src>
import functools
from typing import Callable, Optional, Union

import jax
import jax.numpy as jnp
from jax import lax
from jax.experimental import pallas as pl
from jax.experimental.pallas import tpu as pltpu


# ----------------------------------------------------------------------------
# Chip-generation detection (best effort; conservative fallback)
# ----------------------------------------------------------------------------
@functools.lru_cache(maxsize=1)
def _chip_generation() -> str:
    try:
        kind = jax.devices()[0].device_kind.lower()
    except Exception:
        return "unknown"
    if "v7" in kind or "7x" in kind:
        return "v7"
    if "v6" in kind:
        return "v6"
    if "v5" in kind:
        return "v5"
    return "unknown"


def _bf16_native_transcendentals_ok() -> bool:
    # v6e/v7x have bf16 VALUs and a bf16 EUP; v5e (and unknown) must upcast.
    return _chip_generation() in ("v6", "v7")


def _elementwise_block_bytes() -> int:
    # 4 MiB/buffer on v6e/v7x (16 MiB double-buffered working set, inside the
    # 32 MiB limit requested below); 2 MiB on v5e/unknown so the working set
    # stays comfortably under v5e's smaller scoped-VMEM defaults.
    return (4 << 20) if _chip_generation() in ("v6", "v7") else (2 << 20)


# ----------------------------------------------------------------------------
# Elementwise activation kernel
# ----------------------------------------------------------------------------
def _elementwise_kernel(x_ref, o_ref, *, fn, compute_dtype):
    x = x_ref[...]
    if compute_dtype is not None:
        x = x.astype(compute_dtype)
    o_ref[...] = fn(x).astype(o_ref.dtype)


_RAGGED_SINGLE_BLOCK_MAX = 64 * 1024  # elements


def _run_elementwise(x: jax.Array, fn: Callable,
                     compute_dtype: Optional[jnp.dtype],
                     is_transcendental: bool) -> jax.Array:
    orig_shape = x.shape
    dtype = x.dtype
    total = int(x.size)
    if total == 0:
        return x

    kern = functools.partial(_elementwise_kernel, fn=fn, compute_dtype=compute_dtype)
    itemsize = dtype.itemsize
    lane = 128
    cparams = pltpu.CompilerParams(
        dimension_semantics=("parallel",),
        vmem_limit_bytes=32 << 20)

    if total % lane != 0:
        if total <= _RAGGED_SINGLE_BLOCK_MAX:
            # Lane-ragged but small: process the whole (1, total) slab as a
            # single full-array block — no wrapper pad/slice HBM round-trips.
            slab = jnp.reshape(x, (1, total))
            out = pl.pallas_call(
                kern,
                out_shape=jax.ShapeDtypeStruct((1, total), dtype),
                grid_spec=pltpu.PrefetchScalarGridSpec(
                    num_scalar_prefetch=0,
                    grid=(1,),
                    in_specs=[pl.BlockSpec((1, total), lambda i: (0, 0))],
                    out_specs=pl.BlockSpec((1, total), lambda i: (0, 0)),
                ),
                compiler_params=cparams,
            )(slab)
            return jnp.reshape(out, orig_shape)
        # TODO(synk): very large lane-ragged inputs still pay a pad + slice
        # HBM round-trip; handle the tail with an in-kernel masked store.
        padded = ((total + lane - 1) // lane) * lane
        flat = jnp.pad(jnp.reshape(x, (total,)), (0, padded - total))
    else:
        padded = total
        flat = jnp.reshape(x, (total,))

    # Widest lane-dense factorization (unmasked full-lane stores, big DMAs).
    lane_width = lane
    for cand in (16384, 8192, 4096, 2048, 1024, 512, 256, 128):
        if padded % cand == 0:
            lane_width = cand
            break
    rows = padded // lane_width

    target_block_bytes = _elementwise_block_bytes()
    rows_per_block = max(8, (target_block_bytes // (lane_width * itemsize)) // 8 * 8)
    if rows <= rows_per_block:
        if rows >= 16:
            # Keep >= 2 grid steps so both v7x TensorCores get a share of the
            # "parallel" axis (neutral elsewhere).
            rows_per_block = ((pl.cdiv(rows, 2) + 7) // 8) * 8
        else:
            rows_per_block = rows          # full-dim block is always legal
    grid = pl.cdiv(rows, rows_per_block)

    slab = jnp.reshape(flat, (rows, lane_width))

    out = pl.pallas_call(
        kern,
        out_shape=jax.ShapeDtypeStruct((rows, lane_width), dtype),
        grid_spec=pltpu.PrefetchScalarGridSpec(
            num_scalar_prefetch=0,
            grid=(grid,),
            in_specs=[pl.BlockSpec((rows_per_block, lane_width), lambda i: (i, 0))],
            out_specs=pl.BlockSpec((rows_per_block, lane_width), lambda i: (i, 0)),
        ),
        compiler_params=cparams,
        cost_estimate=pl.CostEstimate(
            flops=4 * total,
            transcendentals=(total if is_transcendental else 0),
            bytes_accessed=2 * padded * itemsize),
    )(slab)

    if padded != total:
        out = jnp.reshape(out, (padded,))[:total]
    return jnp.reshape(out, orig_shape)


# ----------------------------------------------------------------------------
# Channel-softmax kernel (softmax2d / softmax(dim=1) / logsoftmax(dim=1))
# ----------------------------------------------------------------------------
def _channel_softmax_kernel(x_ref, o_ref, *, log, approx_recip):
    # x_ref: (1, C, THW) — reduce over axis 1 (channels); spatial lanes indep.
    x = x_ref[...].astype(jnp.float32)
    m = jnp.max(x, axis=1, keepdims=True)
    e = jnp.exp(x - m)
    s = jnp.sum(e, axis=1, keepdims=True)
    if log:
        o_ref[...] = ((x - m) - jnp.log(s)).astype(o_ref.dtype)
    else:
        o_ref[...] = (e * pl.reciprocal(s, approx=approx_recip)).astype(o_ref.dtype)


def _run_channel_softmax(x: jax.Array, log: bool) -> jax.Array:
    if x.ndim < 2:
        raise ValueError("channel softmax expects an input of rank >= 2 (N, C, ...)")
    # TODO(synk): only channel-axis (dim=1) softmax is lowered to this kernel.
    B, C = x.shape[0], x.shape[1]
    hw = 1
    for d in x.shape[2:]:
        hw *= d
    x3 = jnp.reshape(x, (B, C, hw))
    itemsize = x.dtype.itemsize

    # Size the spatial tile by the f32 working set (the kernel upcasts and
    # holds ~3 live f32 (C, thw) slabs: x, e and the result), so bf16 inputs
    # don't spill the vreg file or blow scoped VMEM. ~512 KiB per f32 slab,
    # ~1.5 MiB live per block — safe on v5e/v6e/v7x with double buffering.
    f32_slab_bytes = 512 * 1024
    thw_cap = max(128, (f32_slab_bytes // (C * 4)) // 128 * 128)
    if hw <= thw_cap:
        thw = hw               # full-dim last block dim: always legal
    else:
        thw = thw_cap          # multiple of 128; ragged last block is masked
    n_hw = pl.cdiv(hw, thw)

    # Approx (EUP vrcp) reciprocal only when the output dtype absorbs its
    # ~bf16-level error; exact reciprocal for f32 outputs.
    approx_recip = (not log) and x.dtype != jnp.float32

    out = pl.pallas_call(
        functools.partial(_channel_softmax_kernel, log=log, approx_recip=approx_recip),
        out_shape=jax.ShapeDtypeStruct((B, C, hw), x.dtype),
        grid_spec=pltpu.PrefetchScalarGridSpec(
            num_scalar_prefetch=0,
            grid=(n_hw, B),
            in_specs=[pl.BlockSpec((1, C, thw), lambda h, b: (b, 0, h))],
            out_specs=pl.BlockSpec((1, C, thw), lambda h, b: (b, 0, h)),
        ),
        compiler_params=pltpu.CompilerParams(
            dimension_semantics=("parallel", "parallel"),
            vmem_limit_bytes=32 * 1024 * 1024),
        cost_estimate=pl.CostEstimate(
            flops=5 * B * C * hw,
            transcendentals=B * C * hw,
            bytes_accessed=2 * B * C * hw * itemsize),
    )(x3)

    return jnp.reshape(out, x.shape)


# ----------------------------------------------------------------------------
# Activation functions (match PyTorch defaults)
# ----------------------------------------------------------------------------
def _identity(x):
    return x


def _sigmoid(x):
    return 1.0 / (1.0 + jnp.exp(-x))


def _tanh(x):
    return jnp.tanh(x)


def _relu(x):
    return jnp.maximum(x, 0.0)


def _relu6(x):
    return jnp.clip(x, 0.0, 6.0)


def _leakyrelu(x, negative_slope=0.01):
    return jnp.where(x >= 0.0, x, negative_slope * x)


def _gelu(x):
    # nn.GELU default is the exact erf formulation.
    return 0.5 * x * (1.0 + lax.erf(x / jnp.sqrt(2.0).astype(x.dtype)))


def _silu(x):
    return x * _sigmoid(x)


def _softplus(x):
    # numerically stable softplus
    return jnp.maximum(x, 0.0) + jnp.log1p(jnp.exp(-jnp.abs(x)))


def _mish(x):
    return x * jnp.tanh(_softplus(x))


def _elu(x, alpha=1.0):
    return jnp.where(x > 0.0, x, alpha * (jnp.exp(x) - 1.0))


# name -> (fn, needs_f32, bf16_native_ok).
#   needs_f32: transcendental op — upcast to f32 unless a native bf16 path is
#     both available (v6e/v7x) and numerically safe for this op.
#   bf16_native_ok: the op tolerates bf16-native transcendentals (sigmoid/
#     tanh/silu); erf / softplus-chain ops (gelu/mish/elu) stay in f32.
_ELEMENTWISE = {
    "identity": (_identity, False, True),
    "sigmoid": (_sigmoid, True, True),
    "tanh": (_tanh, True, True),
    "relu": (_relu, False, True),
    "relu6": (_relu6, False, True),
    "leakyrelu": (_leakyrelu, False, True),
    "gelu": (_gelu, True, False),
    "silu": (_silu, True, True),
    "mish": (_mish, True, False),
    "elu": (_elu, True, False),
}
_CHANNEL_SOFTMAX = {"softmax2d", "softmax", "logsoftmax"}


# ----------------------------------------------------------------------------
# Activation wrapper (mirrors the PyTorch module's dispatch logic)
# ----------------------------------------------------------------------------
class ActivationPallas:
    """Pallas equivalent of models/segmentation/modules.py::Activation."""

    def __init__(self, name: Union[str, Callable, None], **params):
        # `inplace` has no meaning in a functional framework; drop it.
        params.pop("inplace", None)
        self._params = params
        self._is_identity = False
        self._bf16_ok = False

        if name is None:
            self._kind = "elementwise"
            self._fn = _identity
            self._needs_f32 = False
            self._is_identity = True
        elif isinstance(name, str):
            name = name.lower()
            if name in _ELEMENTWISE:
                self._kind = "elementwise"
                base, needs_f32, bf16_ok = _ELEMENTWISE[name]
                if name == "identity":
                    self._is_identity = True
                if name == "leakyrelu" and "negative_slope" in params:
                    base = functools.partial(
                        _leakyrelu, negative_slope=params["negative_slope"])
                if name == "elu" and "alpha" in params:
                    base = functools.partial(_elu, alpha=params["alpha"])
                self._fn = base
                self._needs_f32 = needs_f32
                self._bf16_ok = bf16_ok
            elif name in _CHANNEL_SOFTMAX:
                # softmax2d fixes dim=1; softmax/logsoftmax default to the
                # channel axis (dim=1) here (PyTorch's heuristic for 4-D).
                dim = params.get("dim", 1)
                if dim != 1:
                    # TODO(synk): only channel-axis (dim=1) softmax is lowered
                    # to the Pallas reduction kernel.
                    raise ValueError("Only dim=1 softmax is supported.")
                self._kind = "logsoftmax" if name == "logsoftmax" else "softmax"
            else:
                raise ValueError(
                    f"Activation '{name}' not supported. Available options: "
                    f"{', '.join(list(_ELEMENTWISE) + sorted(_CHANNEL_SOFTMAX))}"
                )
        elif callable(name):
            self._kind = "elementwise"
            self._fn = name(**params)  # factory, like the PyTorch module
            self._needs_f32 = True     # unknown callable: be conservative
            self._bf16_ok = False
        else:
            raise TypeError(
                f"Activation should be str, callable or None; got {type(name).__name__}"
            )

    def __call__(self, x: jax.Array) -> jax.Array:
        if self._kind == "elementwise":
            if self._is_identity:
                return x  # no-op: don't pay two HBM passes for nothing
            compute_dtype = None
            if self._needs_f32 and x.dtype != jnp.float32:
                if (x.dtype == jnp.bfloat16 and self._bf16_ok
                        and _bf16_native_transcendentals_ok()):
                    compute_dtype = None   # bf16-native on v6e/v7x
                else:
                    compute_dtype = jnp.float32
            return _run_elementwise(x, self._fn, compute_dtype, self._needs_f32)
        if self._kind == "softmax":
            return _run_channel_softmax(x, log=False)
        return _run_channel_softmax(x, log=True)


# ----------------------------------------------------------------------------
# Demo / self-test
# ----------------------------------------------------------------------------
if __name__ == "__main__":
    key = jax.random.PRNGKey(0)
    # Small NCHW input consistent with a segmentation-head activation.
    x = jax.random.normal(key, (2, 4, 16, 16), dtype=jnp.float32)

    references = {
        "identity": lambda v: v,
        "sigmoid": jax.nn.sigmoid,
        "tanh": jnp.tanh,
        "relu": jax.nn.relu,
        "relu6": lambda v: jnp.clip(v, 0.0, 6.0),
        "leakyrelu": lambda v: jax.nn.leaky_relu(v, 0.01),
        "gelu": lambda v: jax.nn.gelu(v, approximate=False),
        "silu": jax.nn.silu,
        "mish": lambda v: v * jnp.tanh(jax.nn.softplus(v)),
        "elu": jax.nn.elu,
        "softmax2d": lambda v: jax.nn.softmax(v, axis=1),
        "logsoftmax": lambda v: jax.nn.log_softmax(v, axis=1),
        "softmax": lambda v: jax.nn.softmax(v, axis=1),
    }

    for name, ref_fn in references.items():
        act = ActivationPallas(name)
        out = jax.block_until_ready(act(x))
        ref = ref_fn(x)
        assert out.shape == x.shape and out.dtype == x.dtype, name
        assert jnp.allclose(out, ref, atol=1e-5, rtol=1e-5), f"mismatch: {name}"

    # Lane-ragged total: now served by the single-block kernel (no pad/slice).
    x_odd = jax.random.normal(jax.random.PRNGKey(1), (3, 5, 7, 3), jnp.float32)
    out_odd = jax.block_until_ready(ActivationPallas("relu")(x_odd))
    assert jnp.allclose(out_odd, jax.nn.relu(x_odd), atol=1e-5, rtol=1e-5)

    # Larger slab: exercises the multi-step grid (>=2 blocks for megacore).
    x_big = jax.random.normal(jax.random.PRNGKey(2), (2, 8, 64, 64), jnp.float32)
    out_big = jax.block_until_ready(ActivationPallas("gelu")(x_big))
    assert jnp.allclose(out_big, jax.nn.gelu(x_big, approximate=False),
                        atol=1e-5, rtol=1e-5)

    # bf16 path (bf16-native transcendentals on v6e/v7x, f32 upcast on v5e).
    x_bf = x.astype(jnp.bfloat16)
    out_bf = jax.block_until_ready(ActivationPallas("silu")(x_bf))
    assert jnp.allclose(out_bf.astype(jnp.float32),
                        jax.nn.silu(x_bf.astype(jnp.float32)),
                        atol=2.5e-2, rtol=2.5e-2)

    out_sm_bf = jax.block_until_ready(ActivationPallas("softmax2d")(x_bf))
    assert jnp.allclose(out_sm_bf.astype(jnp.float32),
                        jax.nn.softmax(x_bf.astype(jnp.float32), axis=1),
                        atol=2.5e-2, rtol=2.5e-2)

    print("KERNEL_OK")
</pallas_src>

<mosaic_0001>
module attributes {stable_mosaic.version = 11 : i64} {
  func.func @_elementwise_kernel(%arg0: i32, %arg1: memref<1x2048xf32, #tpu.memory_space<vmem>>, %arg2: memref<1x2048xf32, #tpu.memory_space<vmem>>) attributes {dimension_semantics = [#tpu.dimension_semantics<parallel>], iteration_bounds = array<i64: 1>, scalar_prefetch = 0 : i64, scratch_operands = 0 : i64, tpu.core_type = #tpu.core_type<tc>, window_params = [{transform_indices = @transform_0, window_bounds = array<i64: 1, 2048>}, {transform_indices = @transform_1, window_bounds = array<i64: 1, 2048>}]} {
    %c0 = arith.constant 0 : index
    %c0_0 = arith.constant 0 : index
    %0 = vector.load %arg1[%c0, %c0_0] : memref<1x2048xf32, #tpu.memory_space<vmem>>, vector<1x2048xf32>
    %cst = arith.constant 0.000000e+00 : f32
    %1 = vector.broadcast %cst : f32 to vector<1x2048xf32>
    %2 = arith.subf %1, %0 : vector<1x2048xf32>
    %3 = math.exp %2 : vector<1x2048xf32>
    %cst_1 = arith.constant 1.000000e+00 : f32
    %4 = vector.broadcast %cst_1 : f32 to vector<1x2048xf32>
    %5 = arith.addf %4, %3 : vector<1x2048xf32>
    %cst_2 = arith.constant 1.000000e+00 : f32
    %6 = vector.broadcast %cst_2 : f32 to vector<1x2048xf32>
    %7 = arith.divf %6, %5 : vector<1x2048xf32>
    %c0_3 = arith.constant 0 : index
    %c0_4 = arith.constant 0 : index
    %8 = vector.load %arg2[%c0_3, %c0_4] : memref<1x2048xf32, #tpu.memory_space<vmem>>, vector<1x2048xf32>
    tpu.vector_store %arg2[%c0_3, %c0_4], %7 {strides = array<i32>} : memref<1x2048xf32, #tpu.memory_space<vmem>>, vector<1x2048xf32>,
    return
  }
  func.func @transform_0(%arg0: i32) -> (i32, i32) {
    %c0_i32 = arith.constant 0 : i32
    %c0_i32_0 = arith.constant 0 : i32
    return %arg0, %c0_i32 : i32, i32
  }
  func.func @transform_1(%arg0: i32) -> (i32, i32) {
    %c0_i32 = arith.constant 0 : i32
    %c0_i32_0 = arith.constant 0 : i32
    return %arg0, %c0_i32 : i32, i32
  }
}

</mosaic_0001>

<llo_original>
// kernel: tpu_custom_call.1
$region0: #{tpu_custom_call.1}
  #allocation0 [shape = 'u32[]', space=smem, size = 0x4, offset = 0x4, fixed_abs, tag = 'smem constant byte address 0x4 - core index']
  #allocation1 [shape = 'u32[144,128]{1,0:T(1,128)}', space=vmem, size = 0x12000, scoped, tag = 'internal scratch']
  %s0 = inlined_call_operand.hbm [shape: f32[1,2048], index: 0, kind: input, shape index: {}]
  %s1 = inlined_call_operand.hbm [shape: f32[1,2048], index: 1, kind: output, shape index: {}]
  %s2 = sld [smem:[#allocation0]]
  $region18: #{tpu_custom_call.1} parent=0
    _
  %s4 = ssub.s32 1, %s2
  %s5 = scalar_select 0, %s4, %s2
  $region1: #{tpu_custom_call.1} parent=0
    #allocation2 [shape = 'u8[8192]{0}', space=vmem, size = 0x2000, scoped, tag = 'input window, operand 0, single buffered']
    #allocation3 [shape = 's32[1]{0}', space=sflag, size = 0x4, scoped, tag = 'scoped memory for tpu_custom_call.1']
    #allocation4 [shape = 's32[1]{0}', space=sflag, size = 0x4, scoped, tag = 'scoped memory for tpu_custom_call.1']
    #allocation5 [shape = 'u8[8192]{0}', space=vmem, size = 0x2000, scoped, tag = 'output window, operand 0, single buffered']
    %6 = vsyncpa [#allocation3], 0
    %7 = vsyncpa [#allocation4], 0
    // Predicated region
    $region2: #{tpu_custom_call.1} parent=1 // pred_check
      _
    $region3: #{tpu_custom_call.1} parent=1 // pred_check_branch
      %9 = sbr.rel (0) target = $region5
    $region4: #{tpu_custom_call.1} parent=1 // pred_region
      %s11 = ssub.s32 256, 256
      %12 = vsyncadd [#allocation3], %s11
      %s14 = sshll.u32 [#allocation2], 4
      %s15 = int_to_ptr.vmem [resolvable:$true] %s14
      %17 = dma.hbm_to_vmem [thread:$0]  %s0, 256, %s15, [#allocation3]
    $region5: #{tpu_custom_call.1} parent=1 // pred_fallthru
      _
    // Predicated region
    $region6: #{tpu_custom_call.1} parent=1 // pred_check
      _
    $region7: #{tpu_custom_call.1} parent=1 // pred_check_branch
      %19 = sbr.rel (0) target = $region9
    $region8: #{tpu_custom_call.1} parent=1 // pred_region
      %20 = dma.done [#allocation3], 256
    $region9: #{tpu_custom_call.1} parent=1 // pred_fallthru
      _
    %v21 = vld [vmem:[#allocation2] sm:$0xff]
    %v22 = vld [vmem:[#allocation2 + $0x8] sm:$0xff]
    %v23 = vsub.f32 0.0, %v21
    %v24 = vsub.f32 0.0, %v22
    %v25 = vmul.f32 %v23, 1.442695
    %v26 = vpow.pop %v25
    %v27 = vmul.f32 %v24, 1.442695
    %v28 = vpow.pop %v27
    %v29 = vadd.f32 %v26, 1.0
    %v30 = vadd.f32 %v28, 1.0
    %v31 = vrcp.pop %v29
    %v32 = vmul.f32 1.0, %v31
    %v33 = vrcp.pop %v30
    %v34 = vmul.f32 1.0, %v33
    %35 = vst [vmem:[#allocation5] sm:$0xff] %v32
    %36 = vst [vmem:[#allocation5 + $0x8] sm:$0xff] %v34
    // Predicated region
    $region10: #{tpu_custom_call.1} parent=1 // pred_check
      _
    $region11: #{tpu_custom_call.1} parent=1 // pred_check_branch
      %38 = sbr.rel (0) target = $region13
    $region12: #{tpu_custom_call.1} parent=1 // pred_region
      %s40 = ssub.s32 256, 256
      %41 = vsyncadd [#allocation4], %s40
      %s43 = sshll.u32 [#allocation5], 4
      %s44 = int_to_ptr.vmem [resolvable:$true] %s43
      %46 = dma.vmem_to_hbm [thread:$0]  %s44, 256, %s1, [#allocation4]
    $region13: #{tpu_custom_call.1} parent=1 // pred_fallthru
      _
    // Predicated region
    $region14: #{tpu_custom_call.1} parent=1 // pred_check
      _
    $region15: #{tpu_custom_call.1} parent=1 // pred_check_branch
      %48 = sbr.rel (0) target = $region17
    $region16: #{tpu_custom_call.1} parent=1 // pred_region
      %49 = dma.done [#allocation4], 256
    $region17: #{tpu_custom_call.1} parent=1 // pred_fallthru
      _
    %50 = vsyncpa [#allocation3], 1
    %51 = vsyncpa [#allocation4], 1

</llo_original>
